<compile_context>
chip_gen: v7x
topology: tpu7x:2x2x1
jax: 0.10.0
libtpu: 0.0.40
codegen_flags: <defaults>
</compile_context>

<pallas_src>
import jax
import jax.numpy as jnp
from jax.experimental import pallas as pl
from jax.experimental.pallas import tpu as pltpu


def bottleneck_kernel(x_ref, scale_ref, shift_ref, w_ref, b_ref, o_ref):
    # x_ref:     (1, C_in, ts)  spatial tile, channels on sublanes, space on lanes
    # scale_ref: (C_in, 1)      folded BN scale  = gamma / sqrt(var + eps)
    # shift_ref: (C_in, 1)      folded BN shift  = beta - mean * scale
    # w_ref:     (C_out, C_in)  conv weight (1x1x1 kernel squeezed)
    # b_ref:     (C_out, 1)     conv bias
    # o_ref:     (1, C_out, ts) lane-dense output tile
    x = x_ref[0]                                        # (C_in, ts)
    y = jnp.maximum(x, 0.0)                             # ReLU
    y = y * scale_ref[...] + shift_ref[...]             # BatchNorm3d (eval)
    out = jnp.dot(w_ref[...], y, preferred_element_type=jnp.float32)
    o_ref[0] = (out + b_ref[...]).astype(o_ref.dtype)   # (C_out, ts)


def bottleneck_forward(x, gamma, beta, running_mean, running_var,
                       conv_w, conv_b, *, eps=1e-5, ts=2048):
    """x: (N, C_in, D, H, W) float32.  Returns (N, C_out, D, H, W)."""
    N, C_in, D, H, W = x.shape
    C_out = conv_w.shape[0]
    S = D * H * W

    # Fold BN into per-channel scale/shift (glue, plain JAX; tiny).
    scale = (gamma / jnp.sqrt(running_var + eps)).astype(jnp.float32)   # (C_in,)
    shift = (beta - running_mean * scale).astype(jnp.float32)           # (C_in,)

    # Conv3d 1x1x1 weight (C_out, C_in, 1, 1, 1) -> (C_out, C_in)
    w_mat = conv_w.reshape(C_out, C_in).astype(jnp.float32)

    # Free reshape: keep NCDHW memory order, spatial flattened onto lanes.
    x_r = x.reshape(N, C_in, S).astype(jnp.float32)

    # Pick a lane tile: keep double-buffered in/out tiles well under the
    # conservative scoped-VMEM budget (works on v5e/v6e/v7x defaults/limits).
    vmem_budget = 24 * 1024 * 1024
    bytes_per_lane = 4 * 2 * (C_in + C_out)            # f32, double buffered
    max_ts = max(128, (vmem_budget // bytes_per_lane) // 128 * 128)
    ts = min(ts, max_ts)
    if S <= ts:
        ts_eff = S                                     # full-extent block is legal
    else:
        ts_eff = max(128, (ts // 128) * 128)           # lane tile: multiple of 128
    num_s = pl.cdiv(S, ts_eff)

    scale_2d = scale.reshape(C_in, 1)
    shift_2d = shift.reshape(C_in, 1)
    bias_2d = conv_b.reshape(C_out, 1).astype(jnp.float32)

    out_r = pl.pallas_call(
        bottleneck_kernel,
        out_shape=jax.ShapeDtypeStruct((N, C_out, S), jnp.float32),
        grid_spec=pltpu.PrefetchScalarGridSpec(
            num_scalar_prefetch=0,
            grid=(N, num_s),
            in_specs=[
                pl.BlockSpec((1, C_in, ts_eff), lambda n, j: (n, 0, j)),  # x tile
                pl.BlockSpec((C_in, 1), lambda n, j: (0, 0)),             # bn scale
                pl.BlockSpec((C_in, 1), lambda n, j: (0, 0)),             # bn shift
                pl.BlockSpec((C_out, C_in), lambda n, j: (0, 0)),         # conv weight
                pl.BlockSpec((C_out, 1), lambda n, j: (0, 0)),            # conv bias
            ],
            out_specs=pl.BlockSpec((1, C_out, ts_eff), lambda n, j: (n, 0, j)),
        ),
        compiler_params=pltpu.CompilerParams(
            dimension_semantics=("parallel", "parallel"),
            vmem_limit_bytes=48 * 1024 * 1024,
        ),
    )(x_r, scale_2d, shift_2d, w_mat, bias_2d)

    return out_r.reshape(N, C_out, D, H, W)            # free reshape, still NCDHW


def bottleneck_reference(x, gamma, beta, running_mean, running_var,
                         conv_w, conv_b, eps=1e-5):
    """Plain-JAX reference mirroring PyTorch eval-mode forward."""
    y = jnp.maximum(x, 0.0)
    inv = 1.0 / jnp.sqrt(running_var + eps)
    y = (y - running_mean[None, :, None, None, None]) * inv[None, :, None, None, None]
    y = y * gamma[None, :, None, None, None] + beta[None, :, None, None, None]
    w2 = conv_w.reshape(conv_w.shape[0], conv_w.shape[1])
    out = jnp.einsum('ncdhw,oc->nodhw', y, w2)
    return out + conv_b[None, :, None, None, None]


if __name__ == "__main__":
    key = jax.random.PRNGKey(0)
    N, C_in, D, H, W = 2, 4, 4, 8, 8
    C_out = 8

    k = jax.random.split(key, 7)
    x = jax.random.normal(k[0], (N, C_in, D, H, W), dtype=jnp.float32)

    # Deterministic parameter init (shapes per PyTorch module __init__).
    gamma = 1.0 + 0.1 * jax.random.normal(k[1], (C_in,), dtype=jnp.float32)
    beta = 0.1 * jax.random.normal(k[2], (C_in,), dtype=jnp.float32)
    running_mean = 0.05 * jax.random.normal(k[3], (C_in,), dtype=jnp.float32)
    running_var = jnp.abs(1.0 + 0.1 * jax.random.normal(k[4], (C_in,), dtype=jnp.float32))
    conv_w = 0.2 * jax.random.normal(k[5], (C_out, C_in, 1, 1, 1), dtype=jnp.float32)
    conv_b = 0.05 * jax.random.normal(k[6], (C_out,), dtype=jnp.float32)

    out = bottleneck_forward(x, gamma, beta, running_mean, running_var,
                             conv_w, conv_b)
    out = jax.block_until_ready(out)

    ref = bottleneck_reference(x, gamma, beta, running_mean, running_var,
                               conv_w, conv_b)
    assert out.shape == (N, C_out, D, H, W), out.shape
    assert jnp.allclose(out, ref, atol=1e-4, rtol=1e-4), \
        float(jnp.max(jnp.abs(out - ref)))

    print("KERNEL_OK")
</pallas_src>

<mosaic_0001>
module attributes {stable_mosaic.version = 11 : i64} {
  func.func @bottleneck_kernel(%arg0: i32, %arg1: i32, %arg2: memref<1x4x256xf32, #tpu.memory_space<vmem>>, %arg3: memref<4x1xf32, #tpu.memory_space<vmem>>, %arg4: memref<4x1xf32, #tpu.memory_space<vmem>>, %arg5: memref<8x4xf32, #tpu.memory_space<vmem>>, %arg6: memref<8x1xf32, #tpu.memory_space<vmem>>, %arg7: memref<1x8x256xf32, #tpu.memory_space<vmem>>) attributes {dimension_semantics = [#tpu.dimension_semantics<parallel>, #tpu.dimension_semantics<parallel>], iteration_bounds = array<i64: 2, 1>, scalar_prefetch = 0 : i64, scratch_operands = 0 : i64, tpu.core_type = #tpu.core_type<tc>, window_params = [{transform_indices = @transform_0, window_bounds = array<i64: 1, 4, 256>}, {pipeline_mode = #tpu.pipeline_mode<synchronous>, transform_indices = @transform_1, window_bounds = array<i64: 4, 1>}, {pipeline_mode = #tpu.pipeline_mode<synchronous>, transform_indices = @transform_2, window_bounds = array<i64: 4, 1>}, {pipeline_mode = #tpu.pipeline_mode<synchronous>, transform_indices = @transform_3, window_bounds = array<i64: 8, 4>}, {pipeline_mode = #tpu.pipeline_mode<synchronous>, transform_indices = @transform_4, window_bounds = array<i64: 8, 1>}, {transform_indices = @transform_5, window_bounds = array<i64: 1, 8, 256>}]} {
    %c0 = arith.constant 0 : index
    %c0_0 = arith.constant 0 : index
    %c0_1 = arith.constant 0 : index
    %0 = vector.load %arg2[%c0, %c0_0, %c0_1] : memref<1x4x256xf32, #tpu.memory_space<vmem>>, vector<1x4x256xf32>
    %1 = vector.shape_cast %0 : vector<1x4x256xf32> to vector<4x256xf32>
    %cst = arith.constant 0.000000e+00 : f32
    %2 = vector.broadcast %cst : f32 to vector<4x256xf32>
    %3 = arith.maximumf %1, %2 : vector<4x256xf32>
    %c0_2 = arith.constant 0 : index
    %c0_3 = arith.constant 0 : index
    %4 = vector.load %arg3[%c0_2, %c0_3] : memref<4x1xf32, #tpu.memory_space<vmem>>, vector<4x1xf32>
    %5 = vector.broadcast %4 : vector<4x1xf32> to vector<4x256xf32>
    %6 = arith.mulf %3, %5 : vector<4x256xf32>
    %c0_4 = arith.constant 0 : index
    %c0_5 = arith.constant 0 : index
    %7 = vector.load %arg4[%c0_4, %c0_5] : memref<4x1xf32, #tpu.memory_space<vmem>>, vector<4x1xf32>
    %8 = vector.broadcast %7 : vector<4x1xf32> to vector<4x256xf32>
    %9 = arith.addf %6, %8 : vector<4x256xf32>
    %c0_6 = arith.constant 0 : index
    %c0_7 = arith.constant 0 : index
    %10 = vector.load %arg5[%c0_6, %c0_7] : memref<8x4xf32, #tpu.memory_space<vmem>>, vector<8x4xf32>
    %cst_8 = arith.constant dense<0.000000e+00> : vector<8x256xf32>
    %11 = tpu.matmul %10, %9, %cst_8 {dimension_numbers = #tpu.dot_dimension_numbers<[1], [0], [0], [1], [0, 0, 1, 1], [], []>} : vector<8x4xf32>, vector<4x256xf32>, vector<8x256xf32> -> vector<8x256xf32>
    %c0_9 = arith.constant 0 : index
    %c0_10 = arith.constant 0 : index
    %12 = vector.load %arg6[%c0_9, %c0_10] : memref<8x1xf32, #tpu.memory_space<vmem>>, vector<8x1xf32>
    %13 = vector.broadcast %12 : vector<8x1xf32> to vector<8x256xf32>
    %14 = arith.addf %11, %13 : vector<8x256xf32>
    %c0_11 = arith.constant 0 : index
    %c0_12 = arith.constant 0 : index
    %c0_13 = arith.constant 0 : index
    %15 = vector.load %arg7[%c0_11, %c0_12, %c0_13] : memref<1x8x256xf32, #tpu.memory_space<vmem>>, vector<1x8x256xf32>
    %16 = vector.shape_cast %15 : vector<1x8x256xf32> to vector<8x256xf32>
    %17 = vector.shape_cast %14 : vector<8x256xf32> to vector<1x8x256xf32>
    tpu.vector_store %arg7[%c0_11, %c0_12, %c0_13], %17 {strides = array<i32>} : memref<1x8x256xf32, #tpu.memory_space<vmem>>, vector<1x8x256xf32>,
    return
  }
  func.func @transform_0(%arg0: i32, %arg1: i32) -> (i32, i32, i32) {
    %c0_i32 = arith.constant 0 : i32
    %c0_i32_0 = arith.constant 0 : i32
    return %arg0, %c0_i32, %arg1 : i32, i32, i32
  }
  func.func @transform_1(%arg0: i32, %arg1: i32) -> (i32, i32) {
    %c0_i32 = arith.constant 0 : i32
    %c0_i32_0 = arith.constant 0 : i32
    %c0_i32_1 = arith.constant 0 : i32
    return %c0_i32, %c0_i32_0 : i32, i32
  }
  func.func @transform_2(%arg0: i32, %arg1: i32) -> (i32, i32) {
    %c0_i32 = arith.constant 0 : i32
    %c0_i32_0 = arith.constant 0 : i32
    %c0_i32_1 = arith.constant 0 : i32
    return %c0_i32, %c0_i32_0 : i32, i32
  }
  func.func @transform_3(%arg0: i32, %arg1: i32) -> (i32, i32) {
    %c0_i32 = arith.constant 0 : i32
    %c0_i32_0 = arith.constant 0 : i32
    %c0_i32_1 = arith.constant 0 : i32
    return %c0_i32, %c0_i32_0 : i32, i32
  }
  func.func @transform_4(%arg0: i32, %arg1: i32) -> (i32, i32) {
    %c0_i32 = arith.constant 0 : i32
    %c0_i32_0 = arith.constant 0 : i32
    %c0_i32_1 = arith.constant 0 : i32
    return %c0_i32, %c0_i32_0 : i32, i32
  }
  func.func @transform_5(%arg0: i32, %arg1: i32) -> (i32, i32, i32) {
    %c0_i32 = arith.constant 0 : i32
    %c0_i32_0 = arith.constant 0 : i32
    return %arg0, %c0_i32, %arg1 : i32, i32, i32
  }
}

</mosaic_0001>

<llo_original>
// kernel: tpu_custom_call.1
$region0: #{tpu_custom_call.1}
  #allocation0 [shape = 'u32[]', space=smem, size = 0x4, offset = 0x4, fixed_abs, tag = 'smem constant byte address 0x4 - core index']
  #allocation1 [shape = 'u32[144,128]{1,0:T(1,128)}', space=vmem, size = 0x12000, scoped, tag = 'internal scratch']
  %s0 = inlined_call_operand.vmem [shape: f32[2,4,256], index: 0, kind: input, shape index: {}]
  %s1 = inlined_call_operand.vmem [shape: f32[4,1], index: 1, kind: input, shape index: {}]
  %s2 = inlined_call_operand.vmem [shape: f32[4,1], index: 2, kind: input, shape index: {}]
  %s3 = inlined_call_operand.vmem [shape: f32[8,4], index: 3, kind: input, shape index: {}]
  %s4 = inlined_call_operand.vmem [shape: f32[8,1], index: 4, kind: input, shape index: {}]
  %s5 = inlined_call_operand.hbm [shape: f32[2,8,256], index: 5, kind: output, shape index: {}]
  %s6 = sld [smem:[#allocation0]]
  $region53: #{tpu_custom_call.1} parent=0
    _
  %s8 = ssub.s32 1, %s6
  %s9 = scalar_select 0, %s8, %s6
  $region1: #{tpu_custom_call.1} parent=0
    #allocation2 [shape = 'u8[16384]{0}', space=vmem, size = 0x4000, scoped, tag = 'output window, operand 0']
    #allocation3 [shape = 's32[2]{0}', space=sflag, size = 0x8, scoped, tag = 'scoped memory for tpu_custom_call.1']
    %10 = vsyncpa [#allocation3], 0
    %s11 = scalar_lea.sflag [#allocation3], 1
    %12 = vsyncpa %s11, 0
    loop: start=0, step=1, limit=4
    $region2: #{tpu_custom_call.1} parent=1 // loop_pre_header
      _
    $region3: #{tpu_custom_call.1} parent=1 // loop_header
      %s14 = sphi 0, %s18
      %p15 = scmp.ge.s32.totalorder %s14, 4
      %s21 = sphi 0, %s33
      %s22 = sphi 0, %s29
      %s23 = sphi 0, %s21
      %s24 = sphi 0, %s22
      %s25 = sphi 0, %s23
      %s26 = sphi 0, %s24
      %s38 = sphi 0, %s40
      %s41 = sphi 0, %s38
      %s42 = sphi 0, %s41
      %s58 = sphi 0, %s42
      %s62 = sphi 0, %s62
      %s64 = sphi 0, %s62
      %s65 = sphi 0, %s64
      %s79 = sphi 0, %s65
      %s83 = sphi 0, %s83
      %s85 = sphi 0, %s83
      %s86 = sphi 0, %s85
      %s100 = sphi 0, %s86
      %s104 = sphi 0, %s104
      %s106 = sphi 0, %s104
      %s107 = sphi 0, %s106
      %s121 = sphi 0, %s107
      %s125 = sphi 0, %s125
      %s127 = sphi 0, %s125
      %s128 = sphi 0, %s127
      %s142 = sphi 0, %s128
      %s150 = sphi 0, %s152
      %s153 = sphi 0, %s150
      %s154 = sphi 0, %s153
      %s170 = sphi 0, %s154
    $region4: #{tpu_custom_call.1} parent=1 // loop_header_branch
      %17 = sbr.rel (%p15) target = $region8
    $region5: #{tpu_custom_call.1} parent=1 // loop_body
      %s19 = ssub.s32 %s14, 1
      %s20 = ssub.s32 %s14, 2
      %s27 = sadd.s32 1, %s22
      %p28 = scmp.ge.s32.totalorder %s27, 1
      %s29 = scalar_select %p28, 0, %s27
      %s30 = sadd.s32 1, %s21
      %s31 = scalar_select %p28, %s30, %s21
      %p32 = scmp.ge.s32.totalorder %s31, 2
      %s33 = scalar_select %p32, 0, %s31
      %s34 = ssub.s32 %s21, %s33
      %s35 = ssub.s32 %s22, %s29
      %s36 = sor.u32 %s34, %s35
      %p37 = scmp.eq.s32.totalorder %s36, 0
      %s39 = sadd.s32 %s38, 1
      %s40 = scalar_select %p37, %s38, %s39
      %p43 = pneg %p37
      %p44 = scmp.eq.s32.totalorder %s14, 1
      %p45 = por %p43, %p44
      %p46 = scmp.ne.s32.totalorder %s38, %s41
      %p47 = scmp.eq.s32.totalorder %s14, 0
      %p48 = por %p46, %p47
      %p49 = scmp.ne.s32.totalorder %s38, %s41
      %p50 = scmp.eq.s32.totalorder %s19, 1
      %p51 = por %p49, %p50
      %p52 = scmp.ne.s32.totalorder %s41, %s42
      %p53 = scmp.eq.s32.totalorder %s19, 0
      %p54 = por %p52, %p53
      %p55 = scmp.ne.s32.totalorder %s41, %s42
      %p56 = scmp.eq.s32.totalorder %s20, 1
      %p57 = por %p55, %p56
      %p59 = scmp.ne.s32.totalorder %s42, %s58
      %p60 = scmp.eq.s32.totalorder %s20, 0
      %p61 = por %p59, %p60
      %s63 = sadd.s32 %s62, 1
      %p66 = scmp.eq.s32.totalorder %s14, 1
      %p67 = scmp.ne.s32.totalorder %s62, %s64
      %p68 = scmp.eq.s32.totalorder %s14, 0
      %p69 = por %p67, %p68
      %p70 = scmp.ne.s32.totalorder %s62, %s64
      %p71 = scmp.eq.s32.totalorder %s19, 1
      %p72 = por %p70, %p71
      %p73 = scmp.ne.s32.totalorder %s64, %s65
      %p74 = scmp.eq.s32.totalorder %s19, 0
      %p75 = por %p73, %p74
      %p76 = scmp.ne.s32.totalorder %s64, %s65
      %p77 = scmp.eq.s32.totalorder %s20, 1
      %p78 = por %p76, %p77
      %p80 = scmp.ne.s32.totalorder %s65, %s79
      %p81 = scmp.eq.s32.totalorder %s20, 0
      %p82 = por %p80, %p81
      %s84 = sadd.s32 %s83, 1
      %p87 = scmp.eq.s32.totalorder %s14, 1
      %p88 = scmp.ne.s32.totalorder %s83, %s85
      %p89 = scmp.eq.s32.totalorder %s14, 0
      %p90 = por %p88, %p89
      %p91 = scmp.ne.s32.totalorder %s83, %s85
      %p92 = scmp.eq.s32.totalorder %s19, 1
      %p93 = por %p91, %p92
      %p94 = scmp.ne.s32.totalorder %s85, %s86
      %p95 = scmp.eq.s32.totalorder %s19, 0
      %p96 = por %p94, %p95
      %p97 = scmp.ne.s32.totalorder %s85, %s86
      %p98 = scmp.eq.s32.totalorder %s20, 1
      %p99 = por %p97, %p98
      %p101 = scmp.ne.s32.totalorder %s86, %s100
      %p102 = scmp.eq.s32.totalorder %s20, 0
      %p103 = por %p101, %p102
      %s105 = sadd.s32 %s104, 1
      %p108 = scmp.eq.s32.totalorder %s14, 1
      %p109 = scmp.ne.s32.totalorder %s104, %s106
      %p110 = scmp.eq.s32.totalorder %s14, 0
      %p111 = por %p109, %p110
      %p112 = scmp.ne.s32.totalorder %s104, %s106
      %p113 = scmp.eq.s32.totalorder %s19, 1
      %p114 = por %p112, %p113
      %p115 = scmp.ne.s32.totalorder %s106, %s107
      %p116 = scmp.eq.s32.totalorder %s19, 0
      %p117 = por %p115, %p116
      %p118 = scmp.ne.s32.totalorder %s106, %s107
      %p119 = scmp.eq.s32.totalorder %s20, 1
      %p120 = por %p118, %p119
      %p122 = scmp.ne.s32.totalorder %s107, %s121
      %p123 = scmp.eq.s32.totalorder %s20, 0
      %p124 = por %p122, %p123
      %s126 = sadd.s32 %s125, 1
      %p129 = scmp.eq.s32.totalorder %s14, 1
      %p130 = scmp.ne.s32.totalorder %s125, %s127
      %p131 = scmp.eq.s32.totalorder %s14, 0
      %p132 = por %p130, %p131
      %p133 = scmp.ne.s32.totalorder %s125, %s127
      %p134 = scmp.eq.s32.totalorder %s19, 1
      %p135 = por %p133, %p134
      %p136 = scmp.ne.s32.totalorder %s127, %s128
      %p137 = scmp.eq.s32.totalorder %s19, 0
      %p138 = por %p136, %p137
      %p139 = scmp.ne.s32.totalorder %s127, %s128
      %p140 = scmp.eq.s32.totalorder %s20, 1
      %p141 = por %p139, %p140
      %p143 = scmp.ne.s32.totalorder %s128, %s142
      %p144 = scmp.eq.s32.totalorder %s20, 0
      %p145 = por %p143, %p144
      %s146 = ssub.s32 %s21, %s33
      %s147 = ssub.s32 %s22, %s29
      %s148 = sor.u32 %s146, %s147
      %p149 = scmp.eq.s32.totalorder %s148, 0
      %s151 = sadd.s32 %s150, 1
      %s152 = scalar_select %p149, %s150, %s151
      %p155 = pneg %p149
      %p156 = scmp.eq.s32.totalorder %s14, 1
      %p157 = por %p155, %p156
      %p158 = scmp.ne.s32.totalorder %s150, %s153
      %p159 = scmp.eq.s32.totalorder %s14, 0
      %p160 = por %p158, %p159
      %p161 = scmp.ne.s32.totalorder %s150, %s153
      %p162 = scmp.eq.s32.totalorder %s19, 1
      %p163 = por %p161, %p162
      %p164 = scmp.ne.s32.totalorder %s153, %s154
      %p165 = scmp.eq.s32.totalorder %s19, 0
      %p166 = por %p164, %p165
      %p167 = scmp.ne.s32.totalorder %s153, %s154
      %p168 = scmp.eq.s32.totalorder %s20, 1
      %p169 = por %p167, %p168
      %p171 = scmp.ne.s32.totalorder %s154, %s170
      %p172 = scmp.eq.s32.totalorder %s20, 0
      %p173 = por %p171, %p172
      %p174 = scmp.le.s32.totalorder 1, %s14
      %p175 = scmp.lt.s32.totalorder %s14, 3
      %p176 = pnand %p174, %p175
      %p177 = pneg %p176
      // Predicated region
      $region9: #{tpu_custom_call.1} parent=5 // pred_check
        _
      $region10: #{tpu_custom_call.1} parent=5 // pred_check_branch
        %179 = sbr.rel (%p176) target = $region12
      $region11: #{tpu_custom_call.1} parent=5 // pred_region
        %s180 = ssub.s32 %s14, 1
        // Predicated region
        $region13: #{tpu_custom_call.1} parent=11 // pred_check
          %p181 = pneg %p75
        $region14: #{tpu_custom_call.1} parent=11 // pred_check_branch
          %183 = sbr.rel (%p181) target = $region16
        $region15: #{tpu_custom_call.1} parent=11 // pred_region
          _
        $region16: #{tpu_custom_call.1} parent=11 // pred_fallthru
          _
        // Predicated region
        $region17: #{tpu_custom_call.1} parent=11 // pred_check
          %p184 = pneg %p96
        $region18: #{tpu_custom_call.1} parent=11 // pred_check_branch
          %186 = sbr.rel (%p184) target = $region20
        $region19: #{tpu_custom_call.1} parent=11 // pred_region
          _
        $region20: #{tpu_custom_call.1} parent=11 // pred_fallthru
          _
        // Predicated region
        $region21: #{tpu_custom_call.1} parent=11 // pred_check
          %p187 = pneg %p117
        $region22: #{tpu_custom_call.1} parent=11 // pred_check_branch
          %189 = sbr.rel (%p187) target = $region24
        $region23: #{tpu_custom_call.1} parent=11 // pred_region
          _
        $region24: #{tpu_custom_call.1} parent=11 // pred_fallthru
          _
        // Predicated region
        $region25: #{tpu_custom_call.1} parent=11 // pred_check
          %p190 = pneg %p138
        $region26: #{tpu_custom_call.1} parent=11 // pred_check_branch
          %192 = sbr.rel (%p190) target = $region28
        $region27: #{tpu_custom_call.1} parent=11 // pred_region
          _
        $region28: #{tpu_custom_call.1} parent=11 // pred_fallthru
          _
      $region12: #{tpu_custom_call.1} parent=5 // pred_fallthru
        _
      %p193 = scmp.lt.s32.totalorder %s14, 2
      // Predicated region
      $region29: #{tpu_custom_call.1} parent=5 // pred_check
        %p194 = pneg %p193
      $region30: #{tpu_custom_call.1} parent=5 // pred_check_branch
        %196 = sbr.rel (%p194) target = $region32
      $region31: #{tpu_custom_call.1} parent=5 // pred_region
        // Predicated region
        $region33: #{tpu_custom_call.1} parent=31 // pred_check
          %p197 = pneg %p48
        $region34: #{tpu_custom_call.1} parent=31 // pred_check_branch
          %199 = sbr.rel (%p197) target = $region36
        $region35: #{tpu_custom_call.1} parent=31 // pred_region
          %s200 = smul.u32 2, %s22
          %p201 = scmp.lt.s32.totalorder %s21, 1
          %s202 = scalar_select %p201, %s21, 1
          %p203 = scmp.lt.s32.totalorder %s200, 1
          %s204 = scalar_select %p203, %s200, 1
          %s205 = smul.addr %s202, 2
          %s206 = sadd.s32 %s204, %s205
          %s207 = smul.addr %s206, 4
          %s208 = scalar_lea.vmem %s0, %s207
          %s209 = smul.u32 2, %s22
        $region36: #{tpu_custom_call.1} parent=31 // pred_fallthru
          _
      $region32: #{tpu_custom_call.1} parent=5 // pred_fallthru
        _
      %p210 = scmp.le.s32.totalorder 1, %s14
      %p211 = scmp.lt.s32.totalorder %s14, 3
      %p212 = pnand %p210, %p211
      %p213 = pneg %p212
      // Predicated region
      $region37: #{tpu_custom_call.1} parent=5 // pred_check
        _
      $region38: #{tpu_custom_call.1} parent=5 // pred_check_branch
        %215 = sbr.rel (%p212) target = $region40
      $region39: #{tpu_custom_call.1} parent=5 // pred_region
        %s216 = ssub.s32 %s14, 1
        %s217 = smul.u32 2, %s24
        %p218 = scmp.lt.s32.totalorder %s23, 1
        %s219 = scalar_select %p218, %s23, 1
        %p220 = scmp.lt.s32.totalorder %s217, 1
        %s221 = scalar_select %p220, %s217, 1
        %s222 = smul.addr %s219, 2
        %s223 = sadd.s32 %s221, %s222
        %s224 = smul.addr %s223, 4
        %s225 = scalar_lea.vmem %s0, %s224
        %p226 = pneg %p54
        %p227 = pneg %p51
        %p228 = pneg %p75
        %p229 = pneg %p72
        %p230 = pneg %p96
        %p231 = pneg %p93
        %p232 = pneg %p117
        %p233 = pneg %p114
        %p234 = pneg %p138
        %p235 = pneg %p135
        %p236 = pneg %p166
        %p237 = pneg %p163
        %s238 = sand.u32 %s153, 1
        %s239 = scalar_lea.sflag [#allocation3], %s238
        %s240 = sand.u32 %s153, 1
        %s241 = smul.addr %s240, 16
        %s242 = scalar_lea.vmem [#allocation2], %s241
        %s243 = smul.u32 2, %s24
        %p244 = scmp.lt.s32.totalorder %s23, 1
        %s245 = scalar_select %p244, %s23, 1
        %p246 = scmp.lt.s32.totalorder %s243, 1
        %s247 = scalar_select %p246, %s243, 1
        %s248 = smul.addr %s245, 2
        %s249 = sadd.s32 %s247, %s248
        %s250 = smul.addr %s249, 4
        %s251 = scalar_lea.vmem %s0, %s250
        %s252 = smul.u32 2, %s24
        %s253 = smul.u32 2, %s24
        %v254 = vld [vmem:[%s251] sm:$0xff]
        %v255 = vmax.f32 %v254, 0.0
        %v256 = vld [vmem:[%s1] sm:$0xf]
        %258 = vset.pattern.permute.xlu0 0
        %259 = vperm.xlu0 %258, %v256
        %v260 = vpop.permute.xlu0 %259
        %v262 = vunpack.c.l.s4 839922192
        %v263 = vunpack.c.0.s8 %v262
        %v264 = vlaneseq
        %v265 = vshrl.u32 %v264, 7
        %v266 = vsub.s32 %v263, %v265
        %v267 = vrot.slane %v260, %v266
        %v269 = vmul.f32 %v255, %v267
        %v270 = vld [vmem:[%s2] sm:$0xf]
        %272 = vset.pattern.permute.xlu0 0
        %273 = vperm.xlu0 %272, %v270
        %v274 = vpop.permute.xlu0 %273
        %v276 = vunpack.c.l.s4 839922192
        %v277 = vunpack.c.0.s8 %v276
        %v278 = vlaneseq
        %v279 = vshrl.u32 %v278, 7
        %v280 = vsub.s32 %v277, %v279
        %v281 = vrot.slane %v274, %v280
        %v283 = vadd.f32 %v269, %v281
        %v284 = vld [vmem:[%s3] sm:$0xff]
        %v285 = vld [vmem:[%s4] sm:$0xff]
        %287 = vset.pattern.permute.xlu0 0
        %288 = vperm.xlu0 %287, %v285
        %v289 = vpop.permute.xlu0 %288
        %v292 = vcombine.high %v283, %v283
        %vm293 = vcmask 31744
        %v295 = vsel %vm293, %v284, 0
        %vm297 = vcmask 1043456
        %v298 = vsel %vm297, %v283, 0
        %v300 = vsel %vm297, %v292, 0
        %302 = vmatprep.subr.mxu0 %v300
        %303 = vmatpush1.msra.mxu0 %v298
        %304 = vmatprep.subr.mxu0 0.0
        %305 = vmatpush1.msra.mxu0 0.0
        %306 = vmatprep.subr.mxu0 0.0
        %307 = vmatpush1.msra.mxu0 0.0
        %308 = vmatprep.subr.mxu0 0.0
        %309 = vmatpush1.msra.mxu0 0.0
        %310 = vmatprep.subr.mxu0 0.0
        %311 = vmatpush1.msra.mxu0 0.0
        %312 = vmatprep.subr.mxu0 0.0
        %313 = vmatpush1.msra.mxu0 0.0
        %314 = vmatprep.subr.mxu0 0.0
        %315 = vmatpush1.msra.mxu0 0.0
        %316 = vmatprep.subr.mxu0 0.0
        %317 = vmatpush1.msra.mxu0 0.0
        %318 = vmatprep.subr.mxu0 0.0
        %319 = vmatpush1.msra.mxu0 0.0
        %320 = vmatprep.subr.mxu0 0.0
        %321 = vmatpush1.msra.mxu0 0.0
        %322 = vmatprep.subr.mxu0 0.0
        %323 = vmatpush1.msra.mxu0 0.0
        %324 = vmatprep.subr.mxu0 0.0
        %325 = vmatpush1.msra.mxu0 0.0
        %326 = vmatprep.subr.mxu0 0.0
        %327 = vmatpush1.msra.mxu0 0.0
        %328 = vmatprep.subr.mxu0 0.0
        %329 = vmatpush1.msra.mxu0 0.0
        %330 = vmatprep.subr.mxu0 0.0
        %331 = vmatpush1.msra.mxu0 0.0
        %332 = vmatprep.subr.mxu0 0.0
        %333 = vmatpush1.msra.mxu0 0.0
        %334 = vmatprep.subr.mxu0 0.0
        %335 = vmatpush1.msra.mxu0 0.0
        %336 = vmatprep.subr.mxu0 0.0
        %337 = vmatpush1.msra.mxu0 0.0
        %338 = vmatprep.subr.mxu0 0.0
        %339 = vmatpush1.msra.mxu0 0.0
        %340 = vmatprep.subr.mxu0 0.0
        %341 = vmatpush1.msra.mxu0 0.0
        %342 = vmatprep.subr.mxu0 0.0
        %343 = vmatpush1.msra.mxu0 0.0
        %344 = vmatprep.subr.mxu0 0.0
        %345 = vmatpush1.msra.mxu0 0.0
        %346 = vmatprep.subr.mxu0 0.0
        %347 = vmatpush1.msra.mxu0 0.0
        %348 = vmatprep.subr.mxu0 0.0
        %349 = vmatpush1.msra.mxu0 0.0
        %350 = vmatprep.subr.mxu0 0.0
        %351 = vmatpush1.msra.mxu0 0.0
        %352 = vmatprep.subr.mxu0 0.0
        %353 = vmatpush1.msra.mxu0 0.0
        %354 = vmatprep.subr.mxu0 0.0
        %355 = vmatpush1.msra.mxu0 0.0
        %356 = vmatprep.subr.mxu0 0.0
        %357 = vmatpush1.msra.mxu0 0.0
        %358 = vmatprep.subr.mxu0 0.0
        %359 = vmatpush1.msra.mxu0 0.0
        %360 = vmatprep.subr.mxu0 0.0
        %361 = vmatpush1.msra.mxu0 0.0
        %362 = vmatprep.subr.mxu0 0.0
        %363 = vmatpush1.msra.mxu0 0.0
        %364 = vmatprep.subr.mxu0 0.0
        %365 = vmatpush1.msra.mxu0 0.0
        %366 = vmatprep.mubr.f32.mxu0 0.0
        %367 = vmatmul.mubr.f32.gmra.mrb[0].mxu0 %v295
        %v368 = vpop.f32.mrb[0].mxu0
        %v369 = vadd.f32 %v289, %v368
        %v370 = vpop.f32.mrb[0].mxu0
        %v371 = vadd.f32 %v289, %v370
        %372 = vdwg.mxu0
        %373 = vst [vmem:[%s242] sm:$0xff] %v369
        %374 = vst [vmem:[%s242 + $0x8] sm:$0xff] %v371
        %s375 = sand.u32 %s153, 1
        %s376 = scalar_lea.sflag [#allocation3], %s375
        %s377 = sand.u32 %s153, 1
        %s378 = smul.addr %s377, 16
        %s379 = scalar_lea.vmem [#allocation2], %s378
        // Predicated region
        $region41: #{tpu_custom_call.1} parent=39 // pred_check
          %p380 = pneg %p163
        $region42: #{tpu_custom_call.1} parent=39 // pred_check_branch
          %382 = sbr.rel (%p380) target = $region44
        $region43: #{tpu_custom_call.1} parent=39 // pred_region
          %s383 = smul.u32 2, %s24
          %s385 = ssub.s32 256, 256
          %386 = vsyncadd %s376, %s385
          %s387 = smul.addr %s23, 2
          %s388 = sadd.s32 %s383, %s387
          %s389 = smul.addr %s388, 128
          %s390 = scalar_lea.hbm %s5, %s389
          %s392 = sshll.u32 %s379, 4
          %s393 = int_to_ptr.vmem [resolvable:$true] %s392
          %395 = dma.vmem_to_hbm [thread:$0]  %s393, 256, %s390, %s376
        $region44: #{tpu_custom_call.1} parent=39 // pred_fallthru
          _
      $region40: #{tpu_custom_call.1} parent=5 // pred_fallthru
        _
      %p396 = scmp.le.s32.totalorder 2, %s14
      // Predicated region
      $region45: #{tpu_custom_call.1} parent=5 // pred_check
        %p397 = pneg %p396
      $region46: #{tpu_custom_call.1} parent=5 // pred_check_branch
        %399 = sbr.rel (%p397) target = $region48
      $region47: #{tpu_custom_call.1} parent=5 // pred_region
        %s400 = ssub.s32 %s14, 2
        // Predicated region
        $region49: #{tpu_custom_call.1} parent=47 // pred_check
          %p401 = pneg %p169
        $region50: #{tpu_custom_call.1} parent=47 // pred_check_branch
          %403 = sbr.rel (%p401) target = $region52
        $region51: #{tpu_custom_call.1} parent=47 // pred_region
          %s404 = sand.u32 %s154, 1
          %s405 = scalar_lea.sflag [#allocation3], %s404
          %s406 = sand.u32 %s154, 1
          %s407 = smul.addr %s406, 16
          %s408 = scalar_lea.vmem [#allocation2], %s407
          %409 = dma.done %s405, 256
        $region52: #{tpu_custom_call.1} parent=47 // pred_fallthru
          _
      $region48: #{tpu_custom_call.1} parent=5 // pred_fallthru
        _
    $region6: #{tpu_custom_call.1} parent=1 // loop_footer
      %s18 = sadd.s32 1, %s14
    $region7: #{tpu_custom_call.1} parent=1 // loop_footer_branch
      %13 = sbr.rel target = $region3
    $region8: #{tpu_custom_call.1} parent=1 // loop_exit
      _
    %410 = vsyncpa [#allocation3], 1
    %s411 = scalar_lea.sflag [#allocation3], 1
    %412 = vsyncpa %s411, 1

</llo_original>
